<compile_context>
chip_gen: v6e
topology: v6e:2x2x1
jax: 0.10.0
libtpu: 0.0.40
codegen_flags: <defaults>
</compile_context>

<pallas_src>
import functools

import jax
import jax.numpy as jnp
from jax import lax
from jax.experimental import pallas as pl
from jax.experimental.pallas import tpu as pltpu


def _round_up(x, m):
    return ((x + m - 1) // m) * m


def _segment_pool_kernel(seg_ref, h_ref, out_ref, cnt_ref, acc_ref, cacc_ref,
                         *, tiles_per_part, n_nodes, mask_rows):
    """Grid = (parts, d_blocks, node_blocks). Node axis (last) is the reduction."""
    p = pl.program_id(0)
    d = pl.program_id(1)
    k = pl.program_id(2)
    last_k = pl.num_programs(2) - 1

    @pl.when(k == 0)
    def _():
        acc_ref[...] = jnp.zeros_like(acc_ref)

    @pl.when(jnp.logical_and(d == 0, k == 0))
    def _():
        cacc_ref[...] = jnp.zeros_like(cacc_ref)

    seg = seg_ref[...]                                   # (1, tn) int32; -1 == ignore
    tn = h_ref.shape[0]
    n_aa_pad = acc_ref.shape[0]
    row_ids = lax.broadcasted_iota(jnp.int32, (n_aa_pad, tn), 0)
    match = row_ids == seg                               # -1 rows never match a row id
    onehot = match.astype(h_ref.dtype)

    x = h_ref[...]                                       # (tn, td) in h.dtype
    if mask_rows:
        # Zero rows past N so garbage in the partial / clamped tile cannot leak (NaN*0).
        start = (p * tiles_per_part + k) * tn
        rows = start + lax.broadcasted_iota(jnp.int32, x.shape, 0)
        x = jnp.where(rows < n_nodes, x, jnp.zeros_like(x))

    # Hot path: segment sum for this node tile as one MXU matmul, f32 accumulation.
    acc_ref[...] += jnp.dot(onehot, x, preferred_element_type=jnp.float32)

    # Counts ride the XLU (cross-lane reduce) — free slot next to the MXU; only once
    # per node tile (first feature block).
    @pl.when(d == 0)
    def _():
        cacc_ref[...] += jnp.sum(match.astype(jnp.float32), axis=1, keepdims=True)

    @pl.when(k == last_k)
    def _():
        out_ref[0] = acc_ref[...].astype(out_ref.dtype)

    @pl.when(jnp.logical_and(d == 0, k == last_k))
    def _():
        cnt_ref[0] = cacc_ref[...]


def _vmem_bytes(tn, td, n_aa_pad, itemsize):
    return (2 * tn * td * itemsize          # h tiles (double-buffered)
            + 2 * 8 * tn * 4                # seg tiles (sublane-padded, double-buffered)
            + n_aa_pad * td * 4             # sums accumulator
            + 2 * n_aa_pad * td * 4         # sums output block (double-buffered)
            + 3 * n_aa_pad * 128 * 4        # counts accumulator + output block
            + 2 * n_aa_pad * tn * 4)        # one-hot / match temporaries


def martini_scatter_reduce(h, martini_aa_full, n_aa, *, reduce="mean",
                           tile_n=512, tile_d=512, num_parts=2):
    """Segment-reduce rows of h whose seg id >= 0 into n_aa rows (seg == -1 ignored)."""
    if reduce not in ("mean", "sum"):
        # TODO(synk): reduce in {"max","min"} needs a masked select path, not a matmul.
        raise NotImplementedError(f"reduce={reduce!r} not implemented")

    N, D = h.shape
    dtype = h.dtype
    itemsize = jnp.dtype(dtype).itemsize

    n_aa_pad = _round_up(max(n_aa, 8), 8)

    # Feature tiling: tile only when D is a lane multiple bigger than tile_d; otherwise
    # the full feature dim is a single block (block dim == array dim, no padding).
    if D % 128 == 0:
        td = min(_round_up(tile_d, 128), D)
        while D % td:
            td -= 128
    else:
        td = D
    d_blocks = D // td

    # Node tile: multiple of 128 (seg lane dim), shrunk if the live set would blow VMEM.
    tn = max(128, (min(tile_n, _round_up(N, 128)) // 128) * 128)
    while tn > 128 and _vmem_bytes(tn, td, n_aa_pad, itemsize) > (40 << 20):
        tn = max(128, ((tn // 2) // 128) * 128)

    h_tiles = -(-N // tn)
    parts = max(1, min(num_parts, h_tiles))        # megacore split of the node stream
    kpp = -(-h_tiles // parts)                     # node tiles per partition
    n_pad_total = parts * kpp * tn
    mask_rows = n_pad_total > N

    # Segment ids: cheap 1-D pad with -1 so padded / overshoot tiles contribute nothing.
    seg = martini_aa_full.astype(jnp.int32)
    if n_pad_total > N:
        seg = jnp.pad(seg, (0, n_pad_total - N), constant_values=-1)
    seg = seg.reshape(1, n_pad_total)

    h_last_tile = h_tiles - 1
    grid = (parts, d_blocks, kpp)

    vmem_limit = int(min(max(2 * _vmem_bytes(tn, td, n_aa_pad, itemsize), 32 << 20),
                         64 << 20))

    kernel = functools.partial(
        _segment_pool_kernel,
        tiles_per_part=kpp, n_nodes=N, mask_rows=mask_rows)

    sums_p, counts_p = pl.pallas_call(
        kernel,
        out_shape=(jax.ShapeDtypeStruct((parts, n_aa_pad, D), jnp.float32),
                   jax.ShapeDtypeStruct((parts, n_aa_pad, 128), jnp.float32)),
        grid_spec=pltpu.PrefetchScalarGridSpec(
            num_scalar_prefetch=0,
            grid=grid,
            in_specs=[
                # segment ids (padded, always in bounds)
                pl.BlockSpec((1, tn), lambda p, d, k: (0, p * kpp + k)),
                # node features; clamp so overshoot tiles re-read valid data (masked out)
                pl.BlockSpec((tn, td),
                             lambda p, d, k: (jnp.minimum(p * kpp + k, h_last_tile), d)),
            ],
            out_specs=[
                pl.BlockSpec((1, n_aa_pad, td), lambda p, d, k: (p, 0, d)),
                pl.BlockSpec((1, n_aa_pad, 128), lambda p, d, k: (p, 0, 0)),
            ],
            scratch_shapes=[pltpu.VMEM((n_aa_pad, td), jnp.float32),
                            pltpu.VMEM((n_aa_pad, 128), jnp.float32)],
        ),
        compiler_params=pltpu.CompilerParams(
            dimension_semantics=("parallel", "arbitrary", "arbitrary"),
            vmem_limit_bytes=vmem_limit,
        ),
    )(seg, h)

    # TODO(synk): if martini_aa_full is sorted per tile, a scalar-prefetched per-tile aa
    # offset table would shrink the one-hot to (A_TILE, tn) and cut FLOPs by ~n_aa.
    sums = jnp.sum(sums_p[:, :n_aa, :], axis=0)
    if reduce == "mean":
        counts = jnp.sum(counts_p[:, :n_aa, 0:1], axis=0)
        sums = sums / jnp.maximum(counts, 1.0)
    return sums.astype(dtype)


def martini_to_atom_pooling(input_dict, *, reduce="mean", n_lig, n_aa):
    """JAX/Pallas equivalent of MartiniToAtomPooling.forward.

    `n_lig` (ligand row count) and `n_aa` (= N_p_aa.sum()) must be static since JAX
    requires static output shapes for the boolean-mask gather / scatter.
    `data_batch["martini_aa_full"]` is martini_aa_batch expanded to all nodes
    (-1 on ligand rows).
    """
    h = input_dict["vi"]
    db = input_dict["data_batch"]
    mol_type = db["mol_type"]

    # h_l = h[mol_type == 1]  (static-size compaction gather: XLA glue, not a kernel)
    lig_idx = jnp.where(mol_type == 1, size=n_lig)[0]
    h_l = h[lig_idx]

    # h_p = scatter(h[mol_type == 0], martini_aa_batch, reduce, dim_size=n_aa)
    h_p = martini_scatter_reduce(h, db["martini_aa_full"], n_aa, reduce=reduce)

    out = dict(input_dict)
    out["h_l"] = h_l
    out["h_p"] = h_p
    return out


def _make_case(key, N, D, n_lig, n_aa):
    k1, k2, k3 = jax.random.split(key, 3)
    h = jax.random.normal(k1, (N, D), jnp.float32)
    perm = jax.random.permutation(k2, N)
    mol_type = jnp.zeros((N,), jnp.int32).at[perm[:n_lig]].set(1)
    aa_rand = jax.random.randint(k3, (N,), 0, n_aa)
    martini_aa_full = jnp.where(mol_type == 0, aa_rand, -1).astype(jnp.int32)
    input_dict = {
        "vi": h,
        "data_batch": {
            "mol_type": mol_type,
            "martini_aa_full": martini_aa_full,
            "N_p_aa_sum": n_aa,
        },
    }
    # Pure-JAX reference.
    onehot = ((jnp.arange(n_aa)[:, None] == martini_aa_full[None, :])
              & (mol_type[None, :] == 0)).astype(jnp.float32)
    ref_sum = onehot @ h
    counts = onehot.sum(axis=1, keepdims=True)
    ref_mean = ref_sum / jnp.maximum(counts, 1.0)
    ref_l = h[jnp.where(mol_type == 1, size=n_lig)[0]]
    return input_dict, ref_l, ref_sum, ref_mean


if __name__ == "__main__":
    key = jax.random.PRNGKey(0)
    k_a, k_b = jax.random.split(key)

    # Case A: node count divides the tile (2 node tiles -> megacore partition per tile).
    N, D, N_LIG, N_AA = 1024, 32, 256, 48
    input_dict, ref_l, ref_sum, ref_mean = _make_case(k_a, N, D, N_LIG, N_AA)
    for reduce, ref_p in (("mean", ref_mean), ("sum", ref_sum)):
        out = martini_to_atom_pooling(input_dict, reduce=reduce, n_lig=N_LIG, n_aa=N_AA)
        h_l = jax.block_until_ready(out["h_l"])
        h_p = jax.block_until_ready(out["h_p"])
        assert h_l.shape == (N_LIG, D) and h_p.shape == (N_AA, D)
        assert jnp.allclose(h_l, ref_l, atol=1e-5), "ligand gather mismatch (A)"
        assert jnp.allclose(h_p, ref_p, atol=1e-4, rtol=1e-4), f"scatter-{reduce} mismatch (A)"

    # Case B: ragged node count (exercises the in-kernel row mask, no h copy/pad).
    N, D, N_LIG, N_AA = 700, 32, 100, 20
    input_dict, ref_l, ref_sum, ref_mean = _make_case(k_b, N, D, N_LIG, N_AA)
    out = martini_to_atom_pooling(input_dict, reduce="mean", n_lig=N_LIG, n_aa=N_AA)
    h_l = jax.block_until_ready(out["h_l"])
    h_p = jax.block_until_ready(out["h_p"])
    assert h_l.shape == (N_LIG, D) and h_p.shape == (N_AA, D)
    assert jnp.allclose(h_l, ref_l, atol=1e-5), "ligand gather mismatch (B)"
    assert jnp.allclose(h_p, ref_mean, atol=1e-4, rtol=1e-4), "scatter-mean mismatch (B)"

    print("KERNEL_OK")
</pallas_src>

<mosaic_0001>
module attributes {stable_mosaic.version = 11 : i64} {
  func.func @_segment_pool_kernel(%arg0: i32, %arg1: i32, %arg2: i32, %arg3: memref<1x512xi32, #tpu.memory_space<vmem>>, %arg4: memref<512x32xf32, #tpu.memory_space<vmem>>, %arg5: memref<1x48x32xf32, #tpu.memory_space<vmem>>, %arg6: memref<1x48x128xf32, #tpu.memory_space<vmem>>, %arg7: memref<48x32xf32, #tpu.memory_space<vmem>>, %arg8: memref<48x128xf32, #tpu.memory_space<vmem>>) attributes {dimension_semantics = [#tpu.dimension_semantics<parallel>, #tpu.dimension_semantics<arbitrary>, #tpu.dimension_semantics<arbitrary>], iteration_bounds = array<i64: 2, 1, 1>, scalar_prefetch = 0 : i64, scratch_operands = 2 : i64, tpu.core_type = #tpu.core_type<tc>, window_params = [{transform_indices = @transform_0, window_bounds = array<i64: 1, 512>}, {transform_indices = @transform_1, window_bounds = array<i64: 512, 32>}, {transform_indices = @transform_2, window_bounds = array<i64: 1, 48, 32>}, {transform_indices = @transform_3, window_bounds = array<i64: 1, 48, 128>}]} {
    %c0_i32 = arith.constant 0 : i32
    %0 = arith.cmpi eq, %arg2, %c0_i32 : i32
    %1 = arith.extui %0 : i1 to i32
    %c0_i32_0 = arith.constant 0 : i32
    %2 = arith.cmpi ne, %1, %c0_i32_0 : i32
    scf.if %2 {
      %cst_18 = arith.constant 0.000000e+00 : f32
      %30 = vector.broadcast %cst_18 : f32 to vector<48x32xf32>
      %c0_19 = arith.constant 0 : index
      %c0_20 = arith.constant 0 : index
      %31 = vector.load %arg7[%c0_19, %c0_20] : memref<48x32xf32, #tpu.memory_space<vmem>>, vector<48x32xf32>
      tpu.vector_store %arg7[%c0_19, %c0_20], %30 {strides = array<i32>} : memref<48x32xf32, #tpu.memory_space<vmem>>, vector<48x32xf32>,
    } else {
    }
    %c0_i32_1 = arith.constant 0 : i32
    %3 = arith.cmpi eq, %arg1, %c0_i32_1 : i32
    %c0_i32_2 = arith.constant 0 : i32
    %4 = arith.cmpi eq, %arg2, %c0_i32_2 : i32
    %5 = arith.andi %3, %4 : i1
    %6 = arith.extui %5 : i1 to i32
    %c0_i32_3 = arith.constant 0 : i32
    %7 = arith.cmpi ne, %6, %c0_i32_3 : i32
    scf.if %7 {
      %cst_18 = arith.constant 0.000000e+00 : f32
      %30 = vector.broadcast %cst_18 : f32 to vector<48x128xf32>
      %c0_19 = arith.constant 0 : index
      %c0_20 = arith.constant 0 : index
      %31 = vector.load %arg8[%c0_19, %c0_20] : memref<48x128xf32, #tpu.memory_space<vmem>>, vector<48x128xf32>
      tpu.vector_store %arg8[%c0_19, %c0_20], %30 {strides = array<i32>} : memref<48x128xf32, #tpu.memory_space<vmem>>, vector<48x128xf32>,
    } else {
    }
    %c0 = arith.constant 0 : index
    %c0_4 = arith.constant 0 : index
    %8 = vector.load %arg3[%c0, %c0_4] : memref<1x512xi32, #tpu.memory_space<vmem>>, vector<1x512xi32>
    %9 = tpu.iota {dimensions = array<i32: 0>} : vector<48x512xi32>
    %10 = vector.broadcast %8 : vector<1x512xi32> to vector<48x512xi32>
    %11 = arith.cmpi eq, %9, %10 : vector<48x512xi32>
    %12 = arith.extui %11 : vector<48x512xi1> to vector<48x512xi32>
    %13 = arith.sitofp %12 : vector<48x512xi32> to vector<48x512xf32>
    %c0_5 = arith.constant 0 : index
    %c0_6 = arith.constant 0 : index
    %14 = vector.load %arg4[%c0_5, %c0_6] : memref<512x32xf32, #tpu.memory_space<vmem>>, vector<512x32xf32>
    %c0_7 = arith.constant 0 : index
    %c0_8 = arith.constant 0 : index
    %15 = vector.load %arg7[%c0_7, %c0_8] : memref<48x32xf32, #tpu.memory_space<vmem>>, vector<48x32xf32>
    %cst = arith.constant dense<0.000000e+00> : vector<48x32xf32>
    %16 = tpu.matmul %13, %14, %cst {dimension_numbers = #tpu.dot_dimension_numbers<[1], [0], [0], [1], [0, 0, 1, 1], [], []>} : vector<48x512xf32>, vector<512x32xf32>, vector<48x32xf32> -> vector<48x32xf32>
    %17 = arith.addf %15, %16 : vector<48x32xf32>
    %c0_9 = arith.constant 0 : index
    %c0_10 = arith.constant 0 : index
    %18 = vector.load %arg7[%c0_9, %c0_10] : memref<48x32xf32, #tpu.memory_space<vmem>>, vector<48x32xf32>
    tpu.vector_store %arg7[%c0_9, %c0_10], %17 {strides = array<i32>} : memref<48x32xf32, #tpu.memory_space<vmem>>, vector<48x32xf32>,
    %c0_i32_11 = arith.constant 0 : i32
    %19 = arith.cmpi eq, %arg1, %c0_i32_11 : i32
    %20 = arith.extui %19 : i1 to i32
    %c0_i32_12 = arith.constant 0 : i32
    %21 = arith.cmpi ne, %20, %c0_i32_12 : i32
    scf.if %21 {
      %c0_18 = arith.constant 0 : index
      %c0_19 = arith.constant 0 : index
      %30 = vector.load %arg8[%c0_18, %c0_19] : memref<48x128xf32, #tpu.memory_space<vmem>>, vector<48x128xf32>
      %31 = arith.extui %11 : vector<48x512xi1> to vector<48x512xi32>
      %32 = arith.sitofp %31 : vector<48x512xi32> to vector<48x512xf32>
      %cst_20 = arith.constant dense<0.000000e+00> : vector<48xf32>
      %33 = vector.multi_reduction <add>, %32, %cst_20 [1] : vector<48x512xf32> to vector<48xf32>
      %34 = vector.shape_cast %33 : vector<48xf32> to vector<48x1xf32>
      %35 = vector.broadcast %34 : vector<48x1xf32> to vector<48x128xf32>
      %36 = arith.addf %30, %35 : vector<48x128xf32>
      %c0_21 = arith.constant 0 : index
      %c0_22 = arith.constant 0 : index
      %37 = vector.load %arg8[%c0_21, %c0_22] : memref<48x128xf32, #tpu.memory_space<vmem>>, vector<48x128xf32>
      tpu.vector_store %arg8[%c0_21, %c0_22], %36 {strides = array<i32>} : memref<48x128xf32, #tpu.memory_space<vmem>>, vector<48x128xf32>,
    } else {
    }
    %c0_i32_13 = arith.constant 0 : i32
    %22 = arith.cmpi eq, %arg2, %c0_i32_13 : i32
    %23 = arith.extui %22 : i1 to i32
    %c0_i32_14 = arith.constant 0 : i32
    %24 = arith.cmpi ne, %23, %c0_i32_14 : i32
    scf.if %24 {
      %c0_18 = arith.constant 0 : index
      %c0_19 = arith.constant 0 : index
      %30 = vector.load %arg7[%c0_18, %c0_19] : memref<48x32xf32, #tpu.memory_space<vmem>>, vector<48x32xf32>
      %c0_20 = arith.constant 0 : index
      %c0_21 = arith.constant 0 : index
      %c0_22 = arith.constant 0 : index
      %31 = vector.load %arg5[%c0_20, %c0_21, %c0_22] : memref<1x48x32xf32, #tpu.memory_space<vmem>>, vector<1x48x32xf32>
      %32 = vector.shape_cast %31 : vector<1x48x32xf32> to vector<48x32xf32>
      %33 = vector.shape_cast %30 : vector<48x32xf32> to vector<1x48x32xf32>
      tpu.vector_store %arg5[%c0_20, %c0_21, %c0_22], %33 {strides = array<i32>} : memref<1x48x32xf32, #tpu.memory_space<vmem>>, vector<1x48x32xf32>,
    } else {
    }
    %c0_i32_15 = arith.constant 0 : i32
    %25 = arith.cmpi eq, %arg1, %c0_i32_15 : i32
    %c0_i32_16 = arith.constant 0 : i32
    %26 = arith.cmpi eq, %arg2, %c0_i32_16 : i32
    %27 = arith.andi %25, %26 : i1
    %28 = arith.extui %27 : i1 to i32
    %c0_i32_17 = arith.constant 0 : i32
    %29 = arith.cmpi ne, %28, %c0_i32_17 : i32
    scf.if %29 {
      %c0_18 = arith.constant 0 : index
      %c0_19 = arith.constant 0 : index
      %30 = vector.load %arg8[%c0_18, %c0_19] : memref<48x128xf32, #tpu.memory_space<vmem>>, vector<48x128xf32>
      %c0_20 = arith.constant 0 : index
      %c0_21 = arith.constant 0 : index
      %c0_22 = arith.constant 0 : index
      %31 = vector.load %arg6[%c0_20, %c0_21, %c0_22] : memref<1x48x128xf32, #tpu.memory_space<vmem>>, vector<1x48x128xf32>
      %32 = vector.shape_cast %31 : vector<1x48x128xf32> to vector<48x128xf32>
      %33 = vector.shape_cast %30 : vector<48x128xf32> to vector<1x48x128xf32>
      tpu.vector_store %arg6[%c0_20, %c0_21, %c0_22], %33 {strides = array<i32>} : memref<1x48x128xf32, #tpu.memory_space<vmem>>, vector<1x48x128xf32>,
    } else {
    }
    return
  }
  func.func @transform_0(%arg0: i32, %arg1: i32, %arg2: i32) -> (i32, i32) {
    %c1_i32 = arith.constant 1 : i32
    %0 = arith.muli %arg0, %c1_i32 : i32
    %1 = arith.addi %0, %arg2 : i32
    %c0_i32 = arith.constant 0 : i32
    %c0_i32_0 = arith.constant 0 : i32
    return %c0_i32, %1 : i32, i32
  }
  func.func @transform_1(%arg0: i32, %arg1: i32, %arg2: i32) -> (i32, i32) {
    %c1_i32 = arith.constant 1 : i32
    %0 = arith.muli %arg0, %c1_i32 : i32
    %1 = arith.addi %0, %arg2 : i32
    %c1_i32_0 = arith.constant 1 : i32
    %2 = arith.minsi %1, %c1_i32_0 : i32
    %c0_i32 = arith.constant 0 : i32
    return %2, %arg1 : i32, i32
  }
  func.func @transform_2(%arg0: i32, %arg1: i32, %arg2: i32) -> (i32, i32, i32) {
    %c0_i32 = arith.constant 0 : i32
    %c0_i32_0 = arith.constant 0 : i32
    return %arg0, %c0_i32, %arg1 : i32, i32, i32
  }
  func.func @transform_3(%arg0: i32, %arg1: i32, %arg2: i32) -> (i32, i32, i32) {
    %c0_i32 = arith.constant 0 : i32
    %c0_i32_0 = arith.constant 0 : i32
    %c0_i32_1 = arith.constant 0 : i32
    return %arg0, %c0_i32, %c0_i32_0 : i32, i32, i32
  }
}

</mosaic_0001>

<llo_original>
// kernel: tpu_custom_call.1
$region0: #{tpu_custom_call.1}
  #allocation0 [shape = 'u32[]', space=smem, size = 0x4, offset = 0x4, fixed_abs, tag = 'smem constant byte address 0x4 - core index']
  #allocation1 [shape = 'u32[144,128]{1,0:T(1,128)}', space=vmem, size = 0x12000, scoped, tag = 'internal scratch']
  #allocation2 [shape = 'f32[48,32]{1,0:T(8,128)}', space=vmem, size = 0x6000, scoped, tag = 'scratch operand']
  #allocation3 [shape = 'f32[48,128]{1,0:T(8,128)}', space=vmem, size = 0x6000, scoped, tag = 'scratch operand']
  %s0 = inlined_call_operand.vmem [shape: s32[1,1024], index: 0, kind: input, shape index: {}]
  %s1 = inlined_call_operand.vmem [shape: f32[1024,32], index: 1, kind: input, shape index: {}]
  %s2 = inlined_call_operand.vmem [shape: f32[2,48,32], index: 2, kind: output, shape index: {0}]
  %s3 = inlined_call_operand.hbm [shape: f32[2,48,128], index: 3, kind: output, shape index: {1}]
  %4 = xla_tuple %s2, %s3
  %s5 = sld [smem:[#allocation0]]
  $region69: #{tpu_custom_call.1} parent=0
    _
  %s7 = ssub.s32 1, %s5
  %s8 = scalar_select 0, %s7, %s5
  $region1: #{tpu_custom_call.1} parent=0
    #allocation4 [shape = 'u8[49152]{0}', space=vmem, size = 0xc000, scoped, tag = 'output window, operand 1']
    #allocation5 [shape = 's32[2]{0}', space=sflag, size = 0x8, scoped, tag = 'scoped memory for tpu_custom_call.1']
    %9 = vsyncpa [#allocation5], 0
    %s10 = scalar_lea.sflag [#allocation5], 1
    %11 = vsyncpa %s10, 0
    loop: start=0, step=1, limit=4
    $region2: #{tpu_custom_call.1} parent=1 // loop_pre_header
      _
    $region3: #{tpu_custom_call.1} parent=1 // loop_header
      %s13 = sphi 0, %s17
      %p14 = scmp.ge.s32.totalorder %s13, 4
      %s20 = sphi 0, %s39
      %s21 = sphi 0, %s35
      %s22 = sphi 0, %s31
      %s23 = sphi 0, %s20
      %s24 = sphi 0, %s21
      %s25 = sphi 0, %s22
      %s26 = sphi 0, %s23
      %s27 = sphi 0, %s24
      %s28 = sphi 0, %s25
      %s44 = sphi 0, %s46
      %s47 = sphi 0, %s44
      %s48 = sphi 0, %s47
      %s64 = sphi 0, %s48
      %s78 = sphi 0, %s80
      %s81 = sphi 0, %s78
      %s82 = sphi 0, %s81
      %s98 = sphi 0, %s82
      %s106 = sphi 0, %s108
      %s109 = sphi 0, %s106
      %s110 = sphi 0, %s109
      %s126 = sphi 0, %s110
      %s132 = sphi 0, %s134
      %s135 = sphi 0, %s132
      %s136 = sphi 0, %s135
      %s152 = sphi 0, %s136
    $region4: #{tpu_custom_call.1} parent=1 // loop_header_branch
      %16 = sbr.rel (%p14) target = $region8
    $region5: #{tpu_custom_call.1} parent=1 // loop_body
      %s18 = ssub.s32 %s13, 1
      %s19 = ssub.s32 %s13, 2
      %s29 = sadd.s32 1, %s22
      %p30 = scmp.ge.s32.totalorder %s29, 1
      %s31 = scalar_select %p30, 0, %s29
      %s32 = sadd.s32 1, %s21
      %s33 = scalar_select %p30, %s32, %s21
      %p34 = scmp.ge.s32.totalorder %s33, 1
      %s35 = scalar_select %p34, 0, %s33
      %s36 = sadd.s32 1, %s20
      %s37 = scalar_select %p34, %s36, %s20
      %p38 = scmp.ge.s32.totalorder %s37, 2
      %s39 = scalar_select %p38, 0, %s37
      %s40 = sadd.s32 %s20, %s22
      %s41 = sadd.s32 %s39, %s31
      %s42 = ssub.s32 %s40, %s41
      %p43 = scmp.eq.s32.totalorder %s42, 0
      %s45 = sadd.s32 %s44, 1
      %s46 = scalar_select %p43, %s44, %s45
      %p49 = pneg %p43
      %p50 = scmp.eq.s32.totalorder %s13, 1
      %p51 = por %p49, %p50
      %p52 = scmp.ne.s32.totalorder %s44, %s47
      %p53 = scmp.eq.s32.totalorder %s13, 0
      %p54 = por %p52, %p53
      %p55 = scmp.ne.s32.totalorder %s44, %s47
      %p56 = scmp.eq.s32.totalorder %s18, 1
      %p57 = por %p55, %p56
      %p58 = scmp.ne.s32.totalorder %s47, %s48
      %p59 = scmp.eq.s32.totalorder %s18, 0
      %p60 = por %p58, %p59
      %p61 = scmp.ne.s32.totalorder %s47, %s48
      %p62 = scmp.eq.s32.totalorder %s19, 1
      %p63 = por %p61, %p62
      %p65 = scmp.ne.s32.totalorder %s48, %s64
      %p66 = scmp.eq.s32.totalorder %s19, 0
      %p67 = por %p65, %p66
      %s68 = sadd.s32 %s20, %s22
      %p69 = scmp.lt.s32.totalorder %s68, 1
      %s70 = scalar_select %p69, %s68, 1
      %s71 = sadd.s32 %s39, %s31
      %p72 = scmp.lt.s32.totalorder %s71, 1
      %s73 = scalar_select %p72, %s71, 1
      %s74 = ssub.s32 %s70, %s73
      %s75 = ssub.s32 %s21, %s35
      %s76 = sor.u32 %s74, %s75
      %p77 = scmp.eq.s32.totalorder %s76, 0
      %s79 = sadd.s32 %s78, 1
      %s80 = scalar_select %p77, %s78, %s79
      %p83 = pneg %p77
      %p84 = scmp.eq.s32.totalorder %s13, 1
      %p85 = por %p83, %p84
      %p86 = scmp.ne.s32.totalorder %s78, %s81
      %p87 = scmp.eq.s32.totalorder %s13, 0
      %p88 = por %p86, %p87
      %p89 = scmp.ne.s32.totalorder %s78, %s81
      %p90 = scmp.eq.s32.totalorder %s18, 1
      %p91 = por %p89, %p90
      %p92 = scmp.ne.s32.totalorder %s81, %s82
      %p93 = scmp.eq.s32.totalorder %s18, 0
      %p94 = por %p92, %p93
      %p95 = scmp.ne.s32.totalorder %s81, %s82
      %p96 = scmp.eq.s32.totalorder %s19, 1
      %p97 = por %p95, %p96
      %p99 = scmp.ne.s32.totalorder %s82, %s98
      %p100 = scmp.eq.s32.totalorder %s19, 0
      %p101 = por %p99, %p100
      %s102 = ssub.s32 %s20, %s39
      %s103 = ssub.s32 %s21, %s35
      %s104 = sor.u32 %s102, %s103
      %p105 = scmp.eq.s32.totalorder %s104, 0
      %s107 = sadd.s32 %s106, 1
      %s108 = scalar_select %p105, %s106, %s107
      %p111 = pneg %p105
      %p112 = scmp.eq.s32.totalorder %s13, 1
      %p113 = por %p111, %p112
      %p114 = scmp.ne.s32.totalorder %s106, %s109
      %p115 = scmp.eq.s32.totalorder %s13, 0
      %p116 = por %p114, %p115
      %p117 = scmp.ne.s32.totalorder %s106, %s109
      %p118 = scmp.eq.s32.totalorder %s18, 1
      %p119 = por %p117, %p118
      %p120 = scmp.ne.s32.totalorder %s109, %s110
      %p121 = scmp.eq.s32.totalorder %s18, 0
      %p122 = por %p120, %p121
      %p123 = scmp.ne.s32.totalorder %s109, %s110
      %p124 = scmp.eq.s32.totalorder %s19, 1
      %p125 = por %p123, %p124
      %p127 = scmp.ne.s32.totalorder %s110, %s126
      %p128 = scmp.eq.s32.totalorder %s19, 0
      %p129 = por %p127, %p128
      %s130 = ssub.s32 %s20, %s39
      %p131 = scmp.eq.s32.totalorder %s130, 0
      %s133 = sadd.s32 %s132, 1
      %s134 = scalar_select %p131, %s132, %s133
      %p137 = pneg %p131
      %p138 = scmp.eq.s32.totalorder %s13, 1
      %p139 = por %p137, %p138
      %p140 = scmp.ne.s32.totalorder %s132, %s135
      %p141 = scmp.eq.s32.totalorder %s13, 0
      %p142 = por %p140, %p141
      %p143 = scmp.ne.s32.totalorder %s132, %s135
      %p144 = scmp.eq.s32.totalorder %s18, 1
      %p145 = por %p143, %p144
      %p146 = scmp.ne.s32.totalorder %s135, %s136
      %p147 = scmp.eq.s32.totalorder %s18, 0
      %p148 = por %p146, %p147
      %p149 = scmp.ne.s32.totalorder %s135, %s136
      %p150 = scmp.eq.s32.totalorder %s19, 1
      %p151 = por %p149, %p150
      %p153 = scmp.ne.s32.totalorder %s136, %s152
      %p154 = scmp.eq.s32.totalorder %s19, 0
      %p155 = por %p153, %p154
      %p156 = scmp.le.s32.totalorder 1, %s13
      %p157 = scmp.lt.s32.totalorder %s13, 3
      %p158 = pnand %p156, %p157
      %p159 = pneg %p158
      // Predicated region
      $region9: #{tpu_custom_call.1} parent=5 // pred_check
        _
      $region10: #{tpu_custom_call.1} parent=5 // pred_check_branch
        %161 = sbr.rel (%p158) target = $region12
      $region11: #{tpu_custom_call.1} parent=5 // pred_region
        %s162 = ssub.s32 %s13, 1
      $region12: #{tpu_custom_call.1} parent=5 // pred_fallthru
        _
      %p163 = scmp.lt.s32.totalorder %s13, 2
      // Predicated region
      $region13: #{tpu_custom_call.1} parent=5 // pred_check
        %p164 = pneg %p163
      $region14: #{tpu_custom_call.1} parent=5 // pred_check_branch
        %166 = sbr.rel (%p164) target = $region16
      $region15: #{tpu_custom_call.1} parent=5 // pred_region
        // Predicated region
        $region17: #{tpu_custom_call.1} parent=15 // pred_check
          %p167 = pneg %p54
        $region18: #{tpu_custom_call.1} parent=15 // pred_check_branch
          %169 = sbr.rel (%p167) target = $region20
        $region19: #{tpu_custom_call.1} parent=15 // pred_region
          %s170 = sadd.s32 %s20, %s22
          %s171 = smul.u32 4, %s170
          %p172 = scmp.lt.s32.totalorder %s171, 7
          %s173 = scalar_select %p172, %s171, 7
          %s174 = scalar_lea.vmem %s0, %s173
          %s175 = sadd.s32 %s20, %s22
          %s176 = smul.u32 4, %s175
        $region20: #{tpu_custom_call.1} parent=15 // pred_fallthru
          _
        // Predicated region
        $region21: #{tpu_custom_call.1} parent=15 // pred_check
          %p177 = pneg %p88
        $region22: #{tpu_custom_call.1} parent=15 // pred_check_branch
          %179 = sbr.rel (%p177) target = $region24
        $region23: #{tpu_custom_call.1} parent=15 // pred_region
          %s180 = sadd.s32 %s20, %s22
          %p181 = scmp.lt.s32.totalorder %s180, 1
          %s182 = scalar_select %p181, %s180, 1
          %s183 = smul.u32 64, %s182
          %p184 = scmp.lt.s32.totalorder %s183, 127
          %s185 = scalar_select %p184, %s183, 127
          %p186 = scmp.lt.s32.totalorder %s21, 0
          %s187 = scalar_select %p186, %s21, 0
          %s188 = sadd.s32 %s187, %s185
          %s189 = smul.addr %s188, 8
          %s190 = scalar_lea.vmem %s1, %s189
          %s191 = sadd.s32 %s20, %s22
          %p192 = scmp.lt.s32.totalorder %s191, 1
          %s193 = scalar_select %p192, %s191, 1
          %s194 = smul.u32 64, %s193
        $region24: #{tpu_custom_call.1} parent=15 // pred_fallthru
          _
      $region16: #{tpu_custom_call.1} parent=5 // pred_fallthru
        _
      %p195 = scmp.le.s32.totalorder 1, %s13
      %p196 = scmp.lt.s32.totalorder %s13, 3
      %p197 = pnand %p195, %p196
      %p198 = pneg %p197
      // Predicated region
      $region25: #{tpu_custom_call.1} parent=5 // pred_check
        _
      $region26: #{tpu_custom_call.1} parent=5 // pred_check_branch
        %200 = sbr.rel (%p197) target = $region28
      $region27: #{tpu_custom_call.1} parent=5 // pred_region
        %s201 = ssub.s32 %s13, 1
        %s202 = sadd.s32 %s23, %s25
        %s203 = smul.u32 4, %s202
        %p204 = scmp.lt.s32.totalorder %s203, 7
        %s205 = scalar_select %p204, %s203, 7
        %s206 = scalar_lea.vmem %s0, %s205
        %p207 = pneg %p60
        %p208 = pneg %p57
        %s209 = sadd.s32 %s23, %s25
        %p210 = scmp.lt.s32.totalorder %s209, 1
        %s211 = scalar_select %p210, %s209, 1
        %s212 = smul.u32 64, %s211
        %p213 = scmp.lt.s32.totalorder %s212, 127
        %s214 = scalar_select %p213, %s212, 127
        %p215 = scmp.lt.s32.totalorder %s24, 0
        %s216 = scalar_select %p215, %s24, 0
        %s217 = sadd.s32 %s216, %s214
        %s218 = smul.addr %s217, 8
        %s219 = scalar_lea.vmem %s1, %s218
        %p220 = pneg %p94
        %p221 = pneg %p91
        %p222 = pneg %p122
        %p223 = pneg %p119
        %p224 = scmp.lt.s32.totalorder %s23, 1
        %s225 = scalar_select %p224, %s23, 1
        %p226 = scmp.lt.s32.totalorder %s24, 0
        %s227 = scalar_select %p226, %s24, 0
        %s228 = smul.addr %s225, 6
        %s229 = sadd.s32 %s227, %s228
        %s230 = smul.addr %s229, 8
        %s231 = scalar_lea.vmem %s2, %s230
        %p232 = pneg %p148
        %p233 = pneg %p145
        %s234 = sand.u32 %s135, 1
        %s235 = scalar_lea.sflag [#allocation5], %s234
        %s236 = sand.u32 %s135, 1
        %s237 = smul.addr %s236, 48
        %s238 = scalar_lea.vmem [#allocation4], %s237
        %s239 = sadd.s32 %s23, %s25
        %s240 = smul.u32 4, %s239
        %p241 = scmp.lt.s32.totalorder %s240, 7
        %s242 = scalar_select %p241, %s240, 7
        %s243 = scalar_lea.vmem %s0, %s242
        %s244 = sadd.s32 %s23, %s25
        %s245 = smul.u32 4, %s244
        %s246 = sadd.s32 %s23, %s25
        %p247 = scmp.lt.s32.totalorder %s246, 1
        %s248 = scalar_select %p247, %s246, 1
        %s249 = smul.u32 64, %s248
        %p250 = scmp.lt.s32.totalorder %s249, 127
        %s251 = scalar_select %p250, %s249, 127
        %p252 = scmp.lt.s32.totalorder %s24, 0
        %s253 = scalar_select %p252, %s24, 0
        %s254 = sadd.s32 %s253, %s251
        %s255 = smul.addr %s254, 8
        %s256 = scalar_lea.vmem %s1, %s255
        %s257 = sadd.s32 %s23, %s25
        %p258 = scmp.lt.s32.totalorder %s257, 1
        %s259 = scalar_select %p258, %s257, 1
        %s260 = smul.u32 64, %s259
        %p261 = scmp.lt.s32.totalorder %s23, 1
        %s262 = scalar_select %p261, %s23, 1
        %p263 = scmp.lt.s32.totalorder %s24, 0
        %s264 = scalar_select %p263, %s24, 0
        %s265 = smul.addr %s262, 6
        %s266 = sadd.s32 %s264, %s265
        %s267 = smul.addr %s266, 8
        %s268 = scalar_lea.vmem %s2, %s267
        %p269 = scmp.eq.s32.totalorder %s25, 0
        // Predicated region
        $region29: #{tpu_custom_call.1} parent=27 // pred_check
          %p270 = pneg %p269
        $region30: #{tpu_custom_call.1} parent=27 // pred_check_branch
          %272 = sbr.rel (%p270) target = $region32
        $region31: #{tpu_custom_call.1} parent=27 // pred_region
          %vm273 = vcmask 261120
          %274 = vst.msk [vmem:[#allocation2] sm:$0xff] %vm273, 0.0
          %275 = vst.msk [vmem:[#allocation2 + $0x8] sm:$0xff] %vm273, 0.0
          %276 = vst.msk [vmem:[#allocation2 + $0x10] sm:$0xff] %vm273, 0.0
          %277 = vst.msk [vmem:[#allocation2 + $0x18] sm:$0xff] %vm273, 0.0
          %278 = vst.msk [vmem:[#allocation2 + $0x20] sm:$0xff] %vm273, 0.0
          %279 = vst.msk [vmem:[#allocation2 + $0x28] sm:$0xff] %vm273, 0.0
        $region32: #{tpu_custom_call.1} parent=27 // pred_fallthru
          _
        %p280 = scmp.eq.s32.totalorder %s24, 0
        %p281 = pnand %p280, %p269
        %p282 = pneg %p281
        // Predicated region
        $region33: #{tpu_custom_call.1} parent=27 // pred_check
          _
        $region34: #{tpu_custom_call.1} parent=27 // pred_check_branch
          %284 = sbr.rel (%p281) target = $region36
        $region35: #{tpu_custom_call.1} parent=27 // pred_region
          %285 = vst [vmem:[#allocation3] sm:$0xff] 0.0
          %286 = vst [vmem:[#allocation3 + $0x8] sm:$0xff] 0.0
          %287 = vst [vmem:[#allocation3 + $0x10] sm:$0xff] 0.0
          %288 = vst [vmem:[#allocation3 + $0x18] sm:$0xff] 0.0
          %289 = vst [vmem:[#allocation3 + $0x20] sm:$0xff] 0.0
          %290 = vst [vmem:[#allocation3 + $0x28] sm:$0xff] 0.0
        $region36: #{tpu_custom_call.1} parent=27 // pred_fallthru
          _
        %v291 = vld [vmem:[%s243] sm:$0xf]
        %v292 = vlaneseq
        %v293 = vshrl.u32 %v292, 7
        %v294 = vadd.s32 %v293, 8
        %v295 = vadd.s32 %v293, 16
        %v296 = vadd.s32 %v293, 24
        %v297 = vadd.s32 %v293, 32
        %v298 = vadd.s32 %v293, 40
        %v299 = vlaneseq
        %v300 = vshrl.u32 %v299, 7
        %v301 = vsub.s32 0, %v300
        %v302 = vrot.slane %v291, %v301
        %v303 = vlaneseq
        %v304 = vshrl.u32 %v303, 7
        %v305 = vsub.s32 1, %v304
        %v306 = vrot.slane %v291, %v305
        %v307 = vlaneseq
        %v308 = vshrl.u32 %v307, 7
        %v309 = vsub.s32 2, %v308
        %v310 = vrot.slane %v291, %v309
        %v311 = vlaneseq
        %v312 = vshrl.u32 %v311, 7
        %v313 = vsub.s32 3, %v312
        %v314 = vrot.slane %v291, %v313
        %vm315 = vcmp.eq.s32.totalorder %v293, %v302
        %vm316 = vcmp.eq.s32.totalorder %v293, %v306
        %vm317 = vcmp.eq.s32.totalorder %v293, %v310
        %vm318 = vcmp.eq.s32.totalorder %v293, %v314
        %vm319 = vcmp.eq.s32.totalorder %v294, %v302
        %vm320 = vcmp.eq.s32.totalorder %v294, %v306
        %vm321 = vcmp.eq.s32.totalorder %v294, %v310
        %vm322 = vcmp.eq.s32.totalorder %v294, %v314
        %vm323 = vcmp.eq.s32.totalorder %v295, %v302
        %vm324 = vcmp.eq.s32.totalorder %v295, %v306
        %vm325 = vcmp.eq.s32.totalorder %v295, %v310
        %vm326 = vcmp.eq.s32.totalorder %v295, %v314
        %vm327 = vcmp.eq.s32.totalorder %v296, %v302
        %vm328 = vcmp.eq.s32.totalorder %v296, %v306
        %vm329 = vcmp.eq.s32.totalorder %v296, %v310
        %vm330 = vcmp.eq.s32.totalorder %v296, %v314
        %vm331 = vcmp.eq.s32.totalorder %v297, %v302
        %vm332 = vcmp.eq.s32.totalorder %v297, %v306
        %vm333 = vcmp.eq.s32.totalorder %v297, %v310
        %vm334 = vcmp.eq.s32.totalorder %v297, %v314
        %vm335 = vcmp.eq.s32.totalorder %v298, %v302
        %vm336 = vcmp.eq.s32.totalorder %v298, %v306
        %vm337 = vcmp.eq.s32.totalorder %v298, %v310
        %vm338 = vcmp.eq.s32.totalorder %v298, %v314
        %v339 = vsel %vm315, 1, 0
        %v340 = vsel %vm316, 1, 0
        %v341 = vsel %vm317, 1, 0
        %v342 = vsel %vm318, 1, 0
        %v343 = vsel %vm319, 1, 0
        %v344 = vsel %vm320, 1, 0
        %v345 = vsel %vm321, 1, 0
        %v346 = vsel %vm322, 1, 0
        %v347 = vsel %vm323, 1, 0
        %v348 = vsel %vm324, 1, 0
        %v349 = vsel %vm325, 1, 0
        %v350 = vsel %vm326, 1, 0
        %v351 = vsel %vm327, 1, 0
        %v352 = vsel %vm328, 1, 0
        %v353 = vsel %vm329, 1, 0
        %v354 = vsel %vm330, 1, 0
        %v355 = vsel %vm331, 1, 0
        %v356 = vsel %vm332, 1, 0
        %v357 = vsel %vm333, 1, 0
        %v358 = vsel %vm334, 1, 0
        %v359 = vsel %vm335, 1, 0
        %v360 = vsel %vm336, 1, 0
        %v361 = vsel %vm337, 1, 0
        %v362 = vsel %vm338, 1, 0
        %v363 = vcvt.s32.f32 %v339
        %v364 = vcvt.s32.f32 %v340
        %v365 = vcvt.s32.f32 %v341
        %v366 = vcvt.s32.f32 %v342
        %v367 = vcvt.s32.f32 %v343
        %v368 = vcvt.s32.f32 %v344
        %v369 = vcvt.s32.f32 %v345
        %v370 = vcvt.s32.f32 %v346
        %v371 = vcvt.s32.f32 %v347
        %v372 = vcvt.s32.f32 %v348
        %v373 = vcvt.s32.f32 %v349
        %v374 = vcvt.s32.f32 %v350
        %v375 = vcvt.s32.f32 %v351
        %v376 = vcvt.s32.f32 %v352
        %v377 = vcvt.s32.f32 %v353
        %v378 = vcvt.s32.f32 %v354
        %v379 = vcvt.s32.f32 %v355
        %v380 = vcvt.s32.f32 %v356
        %v381 = vcvt.s32.f32 %v357
        %v382 = vcvt.s32.f32 %v358
        %v383 = vcvt.s32.f32 %v359
        %v384 = vcvt.s32.f32 %v360
        %v385 = vcvt.s32.f32 %v361
        %v386 = vcvt.s32.f32 %v362
        %v387 = vld [vmem:[%s256] sm:$0xff]
        %v388 = vld [vmem:[%s256 + $0x8] sm:$0xff]
        %v389 = vld [vmem:[%s256 + $0x10] sm:$0xff]
        %v390 = vld [vmem:[%s256 + $0x18] sm:$0xff]
        %v391 = vld [vmem:[%s256 + $0x20] sm:$0xff]
        %v392 = vld [vmem:[%s256 + $0x28] sm:$0xff]
        %v393 = vld [vmem:[%s256 + $0x30] sm:$0xff]
        %v394 = vld [vmem:[%s256 + $0x38] sm:$0xff]
        %v395 = vld [vmem:[%s256 + $0x40] sm:$0xff]
        %v396 = vld [vmem:[%s256 + $0x48] sm:$0xff]
        %v397 = vld [vmem:[%s256 + $0x50] sm:$0xff]
        %v398 = vld [vmem:[%s256 + $0x58] sm:$0xff]
        %v399 = vld [vmem:[%s256 + $0x60] sm:$0xff]
        %v400 = vld [vmem:[%s256 + $0x68] sm:$0xff]
        %v401 = vld [vmem:[%s256 + $0x70] sm:$0xff]
        %v402 = vld [vmem:[%s256 + $0x78] sm:$0xff]
        %v403 = vld [vmem:[%s256 + $0x80] sm:$0xff]
        %v404 = vld [vmem:[%s256 + $0x88] sm:$0xff]
        %v405 = vld [vmem:[%s256 + $0x90] sm:$0xff]
        %v406 = vld [vmem:[%s256 + $0x98] sm:$0xff]
        %v407 = vld [vmem:[%s256 + $0xa0] sm:$0xff]
        %v408 = vld [vmem:[%s256 + $0xa8] sm:$0xff]
        %v409 = vld [vmem:[%s256 + $0xb0] sm:$0xff]
        %v410 = vld [vmem:[%s256 + $0xb8] sm:$0xff]
        %v411 = vld [vmem:[%s256 + $0xc0] sm:$0xff]
        %v412 = vld [vmem:[%s256 + $0xc8] sm:$0xff]
        %v413 = vld [vmem:[%s256 + $0xd0] sm:$0xff]
        %v414 = vld [vmem:[%s256 + $0xd8] sm:$0xff]
        %v415 = vld [vmem:[%s256 + $0xe0] sm:$0xff]
        %v416 = vld [vmem:[%s256 + $0xe8] sm:$0xff]
        %v417 = vld [vmem:[%s256 + $0xf0] sm:$0xff]
        %v418 = vld [vmem:[%s256 + $0xf8] sm:$0xff]
        %v419 = vld [vmem:[%s256 + $0x100] sm:$0xff]
        %v420 = vld [vmem:[%s256 + $0x108] sm:$0xff]
        %v421 = vld [vmem:[%s256 + $0x110] sm:$0xff]
        %v422 = vld [vmem:[%s256 + $0x118] sm:$0xff]
        %v423 = vld [vmem:[%s256 + $0x120] sm:$0xff]
        %v424 = vld [vmem:[%s256 + $0x128] sm:$0xff]
        %v425 = vld [vmem:[%s256 + $0x130] sm:$0xff]
        %v426 = vld [vmem:[%s256 + $0x138] sm:$0xff]
        %v427 = vld [vmem:[%s256 + $0x140] sm:$0xff]
        %v428 = vld [vmem:[%s256 + $0x148] sm:$0xff]
        %v429 = vld [vmem:[%s256 + $0x150] sm:$0xff]
        %v430 = vld [vmem:[%s256 + $0x158] sm:$0xff]
        %v431 = vld [vmem:[%s256 + $0x160] sm:$0xff]
        %v432 = vld [vmem:[%s256 + $0x168] sm:$0xff]
        %v433 = vld [vmem:[%s256 + $0x170] sm:$0xff]
        %v434 = vld [vmem:[%s256 + $0x178] sm:$0xff]
        %v435 = vld [vmem:[%s256 + $0x180] sm:$0xff]
        %v436 = vld [vmem:[%s256 + $0x188] sm:$0xff]
        %v437 = vld [vmem:[%s256 + $0x190] sm:$0xff]
        %v438 = vld [vmem:[%s256 + $0x198] sm:$0xff]
        %v439 = vld [vmem:[%s256 + $0x1a0] sm:$0xff]
        %v440 = vld [vmem:[%s256 + $0x1a8] sm:$0xff]
        %v441 = vld [vmem:[%s256 + $0x1b0] sm:$0xff]
        %v442 = vld [vmem:[%s256 + $0x1b8] sm:$0xff]
        %v443 = vld [vmem:[%s256 + $0x1c0] sm:$0xff]
        %v444 = vld [vmem:[%s256 + $0x1c8] sm:$0xff]
        %v445 = vld [vmem:[%s256 + $0x1d0] sm:$0xff]
        %v446 = vld [vmem:[%s256 + $0x1d8] sm:$0xff]
        %v447 = vld [vmem:[%s256 + $0x1e0] sm:$0xff]
        %v448 = vld [vmem:[%s256 + $0x1e8] sm:$0xff]
        %v449 = vld [vmem:[%s256 + $0x1f0] sm:$0xff]
        %v450 = vld [vmem:[%s256 + $0x1f8] sm:$0xff]
        %v451 = vld [vmem:[#allocation2] sm:$0xff]
        %v452 = vld [vmem:[#allocation2 + $0x8] sm:$0xff]
        %v453 = vld [vmem:[#allocation2 + $0x10] sm:$0xff]
        %v454 = vld [vmem:[#allocation2 + $0x18] sm:$0xff]
        %v455 = vld [vmem:[#allocation2 + $0x20] sm:$0xff]
        %v456 = vld [vmem:[#allocation2 + $0x28] sm:$0xff]
        %457 = vmatprep.subr.mxu0 0.0
        %458 = vmatpush1.msra.mxu0 %v402
        %459 = vmatprep.subr.mxu0 0.0
        %460 = vmatpush1.msra.mxu0 %v401
        %461 = vmatprep.subr.mxu0 0.0
        %462 = vmatpush1.msra.mxu0 %v400
        %463 = vmatprep.subr.mxu0 0.0
        %464 = vmatpush1.msra.mxu0 %v399
        %465 = vmatprep.subr.mxu0 0.0
        %466 = vmatpush1.msra.mxu0 %v398
        %467 = vmatprep.subr.mxu0 0.0
        %468 = vmatpush1.msra.mxu0 %v397
        %469 = vmatprep.subr.mxu0 0.0
        %470 = vmatpush1.msra.mxu0 %v396
        %471 = vmatprep.subr.mxu0 0.0
        %472 = vmatpush1.msra.mxu0 %v395
        %473 = vmatprep.subr.mxu0 0.0
        %474 = vmatpush1.msra.mxu0 %v394
        %475 = vmatprep.subr.mxu0 0.0
        %476 = vmatpush1.msra.mxu0 %v393
        %477 = vmatprep.subr.mxu0 0.0
        %478 = vmatpush1.msra.mxu0 %v392
        %479 = vmatprep.subr.mxu0 0.0
        %480 = vmatpush1.msra.mxu0 %v391
        %481 = vmatprep.subr.mxu0 0.0
        %482 = vmatpush1.msra.mxu0 %v390
        %483 = vmatprep.subr.mxu0 0.0
        %484 = vmatpush1.msra.mxu0 %v389
        %485 = vmatprep.subr.mxu0 0.0
        %486 = vmatpush1.msra.mxu0 %v388
        %487 = vmatprep.subr.mxu0 0.0
        %488 = vmatpush1.msra.mxu0 %v387
        %489 = vmatprep.subr.mxu0 0.0
        %490 = vmatpush2.msra.mxu0 %v418
        %491 = vmatprep.subr.mxu0 0.0
        %492 = vmatpush2.msra.mxu0 %v417
        %493 = vmatprep.subr.mxu0 0.0
        %494 = vmatpush2.msra.mxu0 %v416
        %495 = vmatprep.subr.mxu0 0.0
        %496 = vmatpush2.msra.mxu0 %v415
        %497 = vmatprep.subr.mxu0 0.0
        %498 = vmatpush2.msra.mxu0 %v414
        %499 = vmatprep.subr.mxu0 0.0
        %500 = vmatpush2.msra.mxu0 %v413
        %501 = vmatprep.subr.mxu0 0.0
        %502 = vmatpush2.msra.mxu0 %v412
        %503 = vmatprep.subr.mxu0 0.0
        %504 = vmatpush2.msra.mxu0 %v411
        %505 = vmatprep.subr.mxu0 0.0
        %506 = vmatpush2.msra.mxu0 %v410
        %507 = vmatprep.subr.mxu0 0.0
        %508 = vmatpush2.msra.mxu0 %v409
        %509 = vmatprep.subr.mxu0 0.0
        %510 = vmatpush2.msra.mxu0 %v408
        %511 = vmatprep.subr.mxu0 0.0
        %512 = vmatpush2.msra.mxu0 %v407
        %513 = vmatprep.subr.mxu0 0.0
        %514 = vmatpush2.msra.mxu0 %v406
        %515 = vmatprep.subr.mxu0 0.0
        %516 = vmatpush2.msra.mxu0 %v405
        %517 = vmatprep.subr.mxu0 0.0
        %518 = vmatpush2.msra.mxu0 %v404
        %519 = vmatprep.subr.mxu0 0.0
        %520 = vmatpush2.msra.mxu0 %v403
        %521 = vmatprep.mubr.f32.mxu0 %v364
        %522 = vmatmul.mubr.f32.gmra.mxu0 %v363
        %v523 = vpop.f32.mrf.mxu0
        %v524 = vadd.f32 0.0, %v523
        %v525 = vpop.f32.mrf.mxu0
        %526 = vmatprep.mubr.f32.mxu0 %v368
        %527 = vmatmul.mubr.f32.gmra.mxu0 %v367
        %v528 = vpop.f32.mrf.mxu0
        %v529 = vadd.f32 0.0, %v528
        %v530 = vpop.f32.mrf.mxu0
        %531 = vmatprep.mubr.f32.mxu0 %v372
        %532 = vmatmul.mubr.f32.gmra.mxu0 %v371
        %v533 = vpop.f32.mrf.mxu0
        %v534 = vadd.f32 0.0, %v533
        %v535 = vpop.f32.mrf.mxu0
        %536 = vmatprep.mubr.f32.mxu0 %v376
        %537 = vmatmul.mubr.f32.gmra.mxu0 %v375
        %v538 = vpop.f32.mrf.mxu0
        %v539 = vadd.f32 0.0, %v538
        %v540 = vpop.f32.mrf.mxu0
        %541 = vmatprep.mubr.f32.mxu0 %v380
        %542 = vmatmul.mubr.f32.gmra.mxu0 %v379
        %v543 = vpop.f32.mrf.mxu0
        %v544 = vadd.f32 0.0, %v543
        %v545 = vpop.f32.mrf.mxu0
        %546 = vmatprep.mubr.f32.mxu0 %v384
        %547 = vmatmul.mubr.f32.gmra.mxu0 %v383
        %v548 = vpop.f32.mrf.mxu0
        %v549 = vadd.f32 0.0, %v548
        %v550 = vpop.f32.mrf.mxu0
        %551 = vdwg.mxu0
        %552 = vmatprep.subr.mxu0 0.0
        %553 = vmatpush1.msra.mxu0 %v434
        %554 = vmatprep.subr.mxu0 0.0
        %555 = vmatpush1.msra.mxu0 %v433
        %556 = vmatprep.subr.mxu0 0.0
        %557 = vmatpush1.msra.mxu0 %v432
        %558 = vmatprep.subr.mxu0 0.0
        %559 = vmatpush1.msra.mxu0 %v431
        %560 = vmatprep.subr.mxu0 0.0
        %561 = vmatpush1.msra.mxu0 %v430
        %562 = vmatprep.subr.mxu0 0.0
        %563 = vmatpush1.msra.mxu0 %v429
        %564 = vmatprep.subr.mxu0 0.0
        %565 = vmatpush1.msra.mxu0 %v428
        %566 = vmatprep.subr.mxu0 0.0
        %567 = vmatpush1.msra.mxu0 %v427
        %568 = vmatprep.subr.mxu0 0.0
        %569 = vmatpush1.msra.mxu0 %v426
        %570 = vmatprep.subr.mxu0 0.0
        %571 = vmatpush1.msra.mxu0 %v425
        %572 = vmatprep.subr.mxu0 0.0
        %573 = vmatpush1.msra.mxu0 %v424
        %574 = vmatprep.subr.mxu0 0.0
        %575 = vmatpush1.msra.mxu0 %v423
        %576 = vmatprep.subr.mxu0 0.0
        %577 = vmatpush1.msra.mxu0 %v422
        %578 = vmatprep.subr.mxu0 0.0
        %579 = vmatpush1.msra.mxu0 %v421
        %580 = vmatprep.subr.mxu0 0.0
        %581 = vmatpush1.msra.mxu0 %v420
        %582 = vmatprep.subr.mxu0 0.0
        %583 = vmatpush1.msra.mxu0 %v419
        %584 = vmatprep.subr.mxu0 0.0
        %585 = vmatpush2.msra.mxu0 %v450
        %586 = vmatprep.subr.mxu0 0.0
        %587 = vmatpush2.msra.mxu0 %v449
        %588 = vmatprep.subr.mxu0 0.0
        %589 = vmatpush2.msra.mxu0 %v448
        %590 = vmatprep.subr.mxu0 0.0
        %591 = vmatpush2.msra.mxu0 %v447
        %592 = vmatprep.subr.mxu0 0.0
        %593 = vmatpush2.msra.mxu0 %v446
        %594 = vmatprep.subr.mxu0 0.0
        %595 = vmatpush2.msra.mxu0 %v445
        %596 = vmatprep.subr.mxu0 0.0
        %597 = vmatpush2.msra.mxu0 %v444
        %598 = vmatprep.subr.mxu0 0.0
        %599 = vmatpush2.msra.mxu0 %v443
        %600 = vmatprep.subr.mxu0 0.0
        %601 = vmatpush2.msra.mxu0 %v442
        %602 = vmatprep.subr.mxu0 0.0
        %603 = vmatpush2.msra.mxu0 %v441
        %604 = vmatprep.subr.mxu0 0.0
        %605 = vmatpush2.msra.mxu0 %v440
        %606 = vmatprep.subr.mxu0 0.0
        %607 = vmatpush2.msra.mxu0 %v439
        %608 = vmatprep.subr.mxu0 0.0
        %609 = vmatpush2.msra.mxu0 %v438
        %610 = vmatprep.subr.mxu0 0.0
        %611 = vmatpush2.msra.mxu0 %v437
        %612 = vmatprep.subr.mxu0 0.0
        %613 = vmatpush2.msra.mxu0 %v436
        %614 = vmatprep.subr.mxu0 0.0
        %615 = vmatpush2.msra.mxu0 %v435
        %616 = vmatprep.mubr.f32.mxu0 %v366
        %617 = vmatmul.mubr.f32.gmra.mxu0 %v365
        %v618 = vpop.f32.mrf.mxu0
        %v619 = vadd.f32 %v524, %v618
        %v620 = vpop.f32.mrf.mxu0
        %621 = vmatprep.mubr.f32.mxu0 %v370
        %622 = vmatmul.mubr.f32.gmra.mxu0 %v369
        %v623 = vpop.f32.mrf.mxu0
        %v624 = vadd.f32 %v529, %v623
        %v625 = vpop.f32.mrf.mxu0
        %626 = vmatprep.mubr.f32.mxu0 %v374
        %627 = vmatmul.mubr.f32.gmra.mxu0 %v373
        %v628 = vpop.f32.mrf.mxu0
        %v629 = vadd.f32 %v534, %v628
        %v630 = vpop.f32.mrf.mxu0
        %631 = vmatprep.mubr.f32.mxu0 %v378
        %632 = vmatmul.mubr.f32.gmra.mxu0 %v377
        %v633 = vpop.f32.mrf.mxu0
        %v634 = vadd.f32 %v539, %v633
        %v635 = vpop.f32.mrf.mxu0
        %636 = vmatprep.mubr.f32.mxu0 %v382
        %637 = vmatmul.mubr.f32.gmra.mxu0 %v381
        %v638 = vpop.f32.mrf.mxu0
        %v639 = vadd.f32 %v544, %v638
        %v640 = vpop.f32.mrf.mxu0
        %641 = vmatprep.mubr.f32.mxu0 %v386
        %642 = vmatmul.mubr.f32.gmra.mxu0 %v385
        %v643 = vpop.f32.mrf.mxu0
        %v644 = vadd.f32 %v549, %v643
        %v645 = vpop.f32.mrf.mxu0
        %646 = vdwg.mxu0
        %v647 = vadd.f32 %v451, %v619
        %v648 = vadd.f32 %v452, %v624
        %v649 = vadd.f32 %v453, %v629
        %v650 = vadd.f32 %v454, %v634
        %v651 = vadd.f32 %v455, %v639
        %v652 = vadd.f32 %v456, %v644
        %vm653 = vcmask 261120
        %654 = vst.msk [vmem:[#allocation2] sm:$0xff] %vm653, %v647
        %655 = vst.msk [vmem:[#allocation2 + $0x8] sm:$0xff] %vm653, %v648
        %656 = vst.msk [vmem:[#allocation2 + $0x10] sm:$0xff] %vm653, %v649
        %657 = vst.msk [vmem:[#allocation2 + $0x18] sm:$0xff] %vm653, %v650
        %658 = vst.msk [vmem:[#allocation2 + $0x20] sm:$0xff] %vm653, %v651
        %659 = vst.msk [vmem:[#allocation2 + $0x28] sm:$0xff] %vm653, %v652
        // Predicated region
        $region37: #{tpu_custom_call.1} parent=27 // pred_check
          %p660 = pneg %p280
        $region38: #{tpu_custom_call.1} parent=27 // pred_check_branch
          %662 = sbr.rel (%p660) target = $region40
        $region39: #{tpu_custom_call.1} parent=27 // pred_region
          %v663 = vld [vmem:[#allocation3] sm:$0xff]
          %v664 = vld [vmem:[#allocation3 + $0x8] sm:$0xff]
          %v665 = vld [vmem:[#allocation3 + $0x10] sm:$0xff]
          %v666 = vld [vmem:[#allocation3 + $0x18] sm:$0xff]
          %v667 = vld [vmem:[#allocation3 + $0x20] sm:$0xff]
          %v668 = vld [vmem:[#allocation3 + $0x28] sm:$0xff]
          %v669 = vadd.f32 %v363, %v364
          %v670 = vadd.f32 %v669, %v365
          %v671 = vadd.f32 %v670, %v366
          %672 = vadd.xlane.f32.xlu0 %v671
          %v673 = vpop.xlane.xlu0 %672
          %v674 = vadd.f32 %v367, %v368
          %v675 = vadd.f32 %v674, %v369
          %v676 = vadd.f32 %v675, %v370
          %677 = vadd.xlane.f32.xlu0 %v676
          %v678 = vpop.xlane.xlu0 %677
          %v679 = vadd.f32 %v371, %v372
          %v680 = vadd.f32 %v679, %v373
          %v681 = vadd.f32 %v680, %v374
          %682 = vadd.xlane.f32.xlu0 %v681
          %v683 = vpop.xlane.xlu0 %682
          %v684 = vadd.f32 %v375, %v376
          %v685 = vadd.f32 %v684, %v377
          %v686 = vadd.f32 %v685, %v378
          %687 = vadd.xlane.f32.xlu0 %v686
          %v688 = vpop.xlane.xlu0 %687
          %v689 = vadd.f32 %v379, %v380
          %v690 = vadd.f32 %v689, %v381
          %v691 = vadd.f32 %v690, %v382
          %692 = vadd.xlane.f32.xlu0 %v691
          %v693 = vpop.xlane.xlu0 %692
          %v694 = vadd.f32 %v383, %v384
          %v695 = vadd.f32 %v694, %v385
          %v696 = vadd.f32 %v695, %v386
          %697 = vadd.xlane.f32.xlu0 %v696
          %v698 = vpop.xlane.xlu0 %697
          %v699 = vadd.f32 %v663, %v673
          %v700 = vadd.f32 %v664, %v678
          %v701 = vadd.f32 %v665, %v683
          %v702 = vadd.f32 %v666, %v688
          %v703 = vadd.f32 %v667, %v693
          %v704 = vadd.f32 %v668, %v698
          %705 = vst [vmem:[#allocation3] sm:$0xff] %v699
          %706 = vst [vmem:[#allocation3 + $0x8] sm:$0xff] %v700
          %707 = vst [vmem:[#allocation3 + $0x10] sm:$0xff] %v701
          %708 = vst [vmem:[#allocation3 + $0x18] sm:$0xff] %v702
          %709 = vst [vmem:[#allocation3 + $0x20] sm:$0xff] %v703
          %710 = vst [vmem:[#allocation3 + $0x28] sm:$0xff] %v704
        $region40: #{tpu_custom_call.1} parent=27 // pred_fallthru
          _
        // Predicated region
        $region41: #{tpu_custom_call.1} parent=27 // pred_check
          %p711 = pneg %p269
        $region42: #{tpu_custom_call.1} parent=27 // pred_check_branch
          %713 = sbr.rel (%p711) target = $region44
        $region43: #{tpu_custom_call.1} parent=27 // pred_region
          %v714 = vld [vmem:[#allocation2] sm:$0xff]
          %v715 = vld [vmem:[#allocation2 + $0x8] sm:$0xff]
          %v716 = vld [vmem:[#allocation2 + $0x10] sm:$0xff]
          %v717 = vld [vmem:[#allocation2 + $0x18] sm:$0xff]
          %v718 = vld [vmem:[#allocation2 + $0x20] sm:$0xff]
          %v719 = vld [vmem:[#allocation2 + $0x28] sm:$0xff]
          %720 = vst.msk [vmem:[%s268] sm:$0xff] %vm653, %v714
          %721 = vst.msk [vmem:[%s268 + $0x8] sm:$0xff] %vm653, %v715
          %722 = vst.msk [vmem:[%s268 + $0x10] sm:$0xff] %vm653, %v716
          %723 = vst.msk [vmem:[%s268 + $0x18] sm:$0xff] %vm653, %v717
          %724 = vst.msk [vmem:[%s268 + $0x20] sm:$0xff] %vm653, %v718
          %725 = vst.msk [vmem:[%s268 + $0x28] sm:$0xff] %vm653, %v719
        $region44: #{tpu_custom_call.1} parent=27 // pred_fallthru
          _
        // Predicated region
        $region45: #{tpu_custom_call.1} parent=27 // pred_check
          _
        $region46: #{tpu_custom_call.1} parent=27 // pred_check_branch
          %727 = sbr.rel (%p281) target = $region48
        $region47: #{tpu_custom_call.1} parent=27 // pred_region
          %v728 = vld [vmem:[#allocation3] sm:$0xff]
          %v729 = vld [vmem:[#allocation3 + $0x8] sm:$0xff]
          %v730 = vld [vmem:[#allocation3 + $0x10] sm:$0xff]
          %v731 = vld [vmem:[#allocation3 + $0x18] sm:$0xff]
          %v732 = vld [vmem:[#allocation3 + $0x20] sm:$0xff]
          %v733 = vld [vmem:[#allocation3 + $0x28] sm:$0xff]
          %734 = vst [vmem:[%s238] sm:$0xff] %v728
          %735 = vst [vmem:[%s238 + $0x8] sm:$0xff] %v729
          %736 = vst [vmem:[%s238 + $0x10] sm:$0xff] %v730
          %737 = vst [vmem:[%s238 + $0x18] sm:$0xff] %v731
          %738 = vst [vmem:[%s238 + $0x20] sm:$0xff] %v732
          %739 = vst [vmem:[%s238 + $0x28] sm:$0xff] %v733
        $region48: #{tpu_custom_call.1} parent=27 // pred_fallthru
          _
        %p740 = scmp.lt.s32.totalorder %s23, 1
        %s741 = scalar_select %p740, %s23, 1
        %p742 = scmp.lt.s32.totalorder %s24, 0
        %s743 = scalar_select %p742, %s24, 0
        %s744 = smul.addr %s741, 6
        %s745 = sadd.s32 %s743, %s744
        %s746 = smul.addr %s745, 8
        %s747 = scalar_lea.vmem %s2, %s746
        %s748 = sand.u32 %s135, 1
        %s749 = scalar_lea.sflag [#allocation5], %s748
        %s750 = sand.u32 %s135, 1
        %s751 = smul.addr %s750, 48
        %s752 = scalar_lea.vmem [#allocation4], %s751
        // Predicated region
        $region49: #{tpu_custom_call.1} parent=27 // pred_check
          %p753 = pneg %p119
        $region50: #{tpu_custom_call.1} parent=27 // pred_check_branch
          %755 = sbr.rel (%p753) target = $region52
        $region51: #{tpu_custom_call.1} parent=27 // pred_region
          _
        $region52: #{tpu_custom_call.1} parent=27 // pred_fallthru
          _
        // Predicated region
        $region53: #{tpu_custom_call.1} parent=27 // pred_check
          %p756 = pneg %p145
        $region54: #{tpu_custom_call.1} parent=27 // pred_check_branch
          %758 = sbr.rel (%p756) target = $region56
        $region55: #{tpu_custom_call.1} parent=27 // pred_region
          %s760 = ssub.s32 768, 768
          %761 = vsyncadd %s749, %s760
          %s762 = smul.addr %s23, 6
          %s763 = smul.addr %s762, 128
          %s764 = scalar_lea.hbm %s3, %s763
          %s765 = sshll.u32 %s752, 4
          %s766 = int_to_ptr.vmem [resolvable:$true] %s765
          %771 = dma.vmem_to_hbm [thread:$0]  %s766, 768, %s764, %s749, 128, 128, 8
        $region56: #{tpu_custom_call.1} parent=27 // pred_fallthru
          _
      $region28: #{tpu_custom_call.1} parent=5 // pred_fallthru
        _
      %p772 = scmp.le.s32.totalorder 2, %s13
      // Predicated region
      $region57: #{tpu_custom_call.1} parent=5 // pred_check
        %p773 = pneg %p772
      $region58: #{tpu_custom_call.1} parent=5 // pred_check_branch
        %775 = sbr.rel (%p773) target = $region60
      $region59: #{tpu_custom_call.1} parent=5 // pred_region
        %s776 = ssub.s32 %s13, 2
        // Predicated region
        $region61: #{tpu_custom_call.1} parent=59 // pred_check
          %p777 = pneg %p125
        $region62: #{tpu_custom_call.1} parent=59 // pred_check_branch
          %779 = sbr.rel (%p777) target = $region64
        $region63: #{tpu_custom_call.1} parent=59 // pred_region
          %p780 = scmp.lt.s32.totalorder %s26, 1
          %s781 = scalar_select %p780, %s26, 1
          %p782 = scmp.lt.s32.totalorder %s27, 0
          %s783 = scalar_select %p782, %s27, 0
          %s784 = smul.addr %s781, 6
          %s785 = sadd.s32 %s783, %s784
          %s786 = smul.addr %s785, 8
          %s787 = scalar_lea.vmem %s2, %s786
        $region64: #{tpu_custom_call.1} parent=59 // pred_fallthru
          _
        // Predicated region
        $region65: #{tpu_custom_call.1} parent=59 // pred_check
          %p788 = pneg %p151
        $region66: #{tpu_custom_call.1} parent=59 // pred_check_branch
          %790 = sbr.rel (%p788) target = $region68
        $region67: #{tpu_custom_call.1} parent=59 // pred_region
          %s791 = sand.u32 %s136, 1
          %s792 = scalar_lea.sflag [#allocation5], %s791
          %s793 = sand.u32 %s136, 1
          %s794 = smul.addr %s793, 48
          %s795 = scalar_lea.vmem [#allocation4], %s794
          %796 = dma.done %s792, 768
        $region68: #{tpu_custom_call.1} parent=59 // pred_fallthru
          _
      $region60: #{tpu_custom_call.1} parent=5 // pred_fallthru
        _
    $region6: #{tpu_custom_call.1} parent=1 // loop_footer
      %s17 = sadd.s32 1, %s13
    $region7: #{tpu_custom_call.1} parent=1 // loop_footer_branch
      %12 = sbr.rel target = $region3
    $region8: #{tpu_custom_call.1} parent=1 // loop_exit
      _
    %797 = vsyncpa [#allocation5], 1
    %s798 = scalar_lea.sflag [#allocation5], 1
    %799 = vsyncpa %s798, 1

</llo_original>
